<compile_context>
chip_gen: v5e
topology: v5e:2x2
jax: 0.10.0
libtpu: 0.0.40
codegen_flags: <defaults>
</compile_context>

<pallas_src>
import functools

import jax
import jax.numpy as jnp
from jax import lax
from jax.experimental import pallas as pl
from jax.experimental.pallas import tpu as pltpu


# ----------------------------- Pallas kernel ---------------------------------

def mlp_kernel(x_ref, w1_ref, b1_ref, w2_ref, b2_ref, w3_ref, b3_ref, o_ref,
               *, compute_dtype):
    """Fused 3-layer MLP forward for one batch tile.

    x_ref: (tm, d_in) f32.  w1/w2: (in, out) compute_dtype.  w3: (out_dim, h2)
    compute_dtype (PyTorch layout).  b1/b2: (1, h) f32.  b3: (out_dim, 1) f32.
    o_ref: (out_dim, tm) f32 -- lane-dense (batch along lanes).  Accumulation
    is always f32.
    """
    x = x_ref[...].astype(compute_dtype)

    # layer 1 + ReLU (bias add / gate in f32)
    h = jnp.dot(x, w1_ref[...], preferred_element_type=jnp.float32)
    h = jnp.maximum(h + b1_ref[...], 0.0)

    # layer 2 + ReLU
    h = jnp.dot(h.astype(compute_dtype), w2_ref[...],
                preferred_element_type=jnp.float32)
    h = jnp.maximum(h + b2_ref[...], 0.0)

    # final layer, lane-dense: (out_dim, h2) x (tm, h2)^T -> (out_dim, tm)
    out = lax.dot_general(
        w3_ref[...], h.astype(compute_dtype),
        dimension_numbers=(((1,), (1,)), ((), ())),
        preferred_element_type=jnp.float32)
    o_ref[...] = (out + b3_ref[...]).astype(o_ref.dtype)


# ------------------------------ wrapper ---------------------------------------

def _round_up(x, m):
    return ((x + m - 1) // m) * m


def _num_tensorcores():
    """Best-effort TensorCore count per device (v7x megacore = 2); default 1."""
    try:
        dev = jax.devices()[0]
        for attr in ("num_cores", "core_count"):
            n = getattr(dev, attr, None)
            if isinstance(n, int) and n > 0:
                return int(n)
    except Exception:
        pass
    return 1


def dnn_forward(x, params, *, max_block_m=2048, compute_dtype=jnp.bfloat16,
                n_tiles=None, core_parallel=False):
    """params = [(w1, b1), (w2, b2), (w3, b3)]; w1/w2 are (in, out), w3 is (out, in)."""
    (w1, b1), (w2, b2), (w3, b3) = params
    batch, d_in = x.shape
    h1 = w1.shape[1]
    h2 = w2.shape[1]
    out_dim = w3.shape[0]

    # Pre-cast ALL MXU operand weights once in the wrapper (halves their HBM /
    # resident-VMEM footprint and removes per-step VPU casts in the kernel).
    # Biases stay f32; x stays in its input dtype (no wrapper-side cast of x --
    # that would be a separate un-hidden XLA read+write of x).
    w1c = w1.astype(compute_dtype)
    w2c = w2.astype(compute_dtype)
    w3c = w3.astype(compute_dtype)
    b3c = b3.reshape(out_dim, 1)          # broadcasts over the lane (batch) axis

    # One batch tile per TensorCore when possible: per-grid-step overhead
    # (~0.35us) dominates this kernel's MXU/DMA time at small-to-medium shapes.
    # tm is a multiple of 128 so the lane-dense output tile is unmasked.
    # No padding: pl.cdiv grid + Pallas block clipping handle ragged batches
    # (rows are independent, so OOB garbage never reaches valid outputs).
    if n_tiles is None:
        n_tiles = _num_tensorcores()       # 1 on v5e/v6e, 2 on v7x megacore
    tm = _round_up(pl.cdiv(batch, max(1, n_tiles)), 128)
    tm = min(tm, _round_up(max_block_m, 128))
    grid = (pl.cdiv(batch, tm),)

    kernel = functools.partial(mlp_kernel, compute_dtype=compute_dtype)

    itemsize = lambda a: a.size * a.dtype.itemsize
    flops = 2 * batch * (d_in * h1 + h1 * h2 + h2 * out_dim)
    bytes_accessed = (itemsize(x) + itemsize(w1c) + itemsize(b1) + itemsize(w2c)
                      + itemsize(b2) + itemsize(w3c) + itemsize(b3c)
                      + batch * out_dim * 4)

    batch_sem = pltpu.CORE_PARALLEL if core_parallel else pltpu.PARALLEL

    out_t = pl.pallas_call(
        kernel,
        out_shape=jax.ShapeDtypeStruct((out_dim, batch), jnp.float32),
        grid_spec=pltpu.PrefetchScalarGridSpec(
            num_scalar_prefetch=0,
            grid=grid,
            in_specs=[
                pl.BlockSpec((tm, d_in), lambda i: (i, 0)),   # x tile (pipelined)
                # Weights / biases: constant index_map -> DMA'd once, VMEM resident.
                # TODO(synk): at large hidden dims (>=2048) add
                # pipeline_mode=pl.Buffered(1) and/or tile h1/h2 so resident
                # weights fit v7x's 64 MiB VMEM.
                pl.BlockSpec(w1c.shape, lambda i: (0, 0)),
                pl.BlockSpec(b1.shape,  lambda i: (0, 0)),
                pl.BlockSpec(w2c.shape, lambda i: (0, 0)),
                pl.BlockSpec(b2.shape,  lambda i: (0, 0)),
                pl.BlockSpec(w3c.shape, lambda i: (0, 0)),
                pl.BlockSpec(b3c.shape, lambda i: (0, 0)),
            ],
            # Lane-dense output: batch runs along the 128-lane axis.
            out_specs=pl.BlockSpec((out_dim, tm), lambda i: (0, i)),
        ),
        compiler_params=pltpu.CompilerParams(
            dimension_semantics=(batch_sem,),          # megacore-shard batch
            vmem_limit_bytes=32 * 1024 * 1024),
        cost_estimate=pl.CostEstimate(
            flops=flops, transcendentals=0, bytes_accessed=bytes_accessed),
    )(x, w1c, b1, w2c, b2, w3c, b3c)

    # (out_dim, batch) -> (batch, out_dim); free reshape when out_dim == 1.
    return out_t.T


# ------------------------- deterministic param init --------------------------

def orthogonal_init(key, out_dim, in_dim, scale):
    """Mimics nn.init.orthogonal_ on a (out_dim, in_dim) weight, then * scale."""
    a = jax.random.normal(key, (max(out_dim, in_dim), min(out_dim, in_dim)), jnp.float32)
    q, r = jnp.linalg.qr(a)
    q = q * jnp.sign(jnp.diag(r))          # make decomposition unique (like torch)
    if out_dim < in_dim:
        q = q.T
    w = scale * q[:out_dim, :in_dim]       # shape (out, in), as in PyTorch
    return w.astype(jnp.float32)


def make_dnn_params(key, input_dim, init_scales, hidden_units=(128, 128), output_dim=1):
    dims = (input_dim,) + tuple(hidden_units) + (output_dim,)
    n_layers = len(dims) - 1
    params = []
    for idx, (d_in, d_out, s) in enumerate(zip(dims[:-1], dims[1:], init_scales)):
        key, sub = jax.random.split(key)
        w = orthogonal_init(sub, d_out, d_in, s)   # (out, in) like nn.Linear.weight
        b = jnp.zeros((1, d_out), jnp.float32)     # constant_(bias, 0)
        if idx < n_layers - 1:
            params.append((w.T, b))                # hidden layers: (in, out) for x @ W
        else:
            params.append((w, b))                  # last layer: keep (out, in)
    return params


# ------------------------------ reference (f32) --------------------------------

def dnn_reference(x, params):
    (w1, b1), (w2, b2), (w3, b3) = params
    h = jnp.maximum(x @ w1 + b1, 0.0)
    h = jnp.maximum(h @ w2 + b2, 0.0)
    return h @ w3.T + b3


# --------------------------------- main ---------------------------------------

if __name__ == "__main__":
    key = jax.random.PRNGKey(0)
    k_x, k_p = jax.random.split(key)

    # Lane-friendly small shapes: hidden dims are multiples of 128; the whole
    # batch fits one grid step per TensorCore.
    batch = 512
    input_dim = 64
    hidden_units = (128, 128)
    output_dim = 1
    init_scales = (1.0, 1.0, 1e-3)   # one scale per layer, as the module expects

    params = make_dnn_params(k_p, input_dim, init_scales, hidden_units, output_dim)
    x = jax.random.normal(k_x, (batch, input_dim), jnp.float32)

    # Divisible batch (single grid step on 1-TC chips).
    out = jax.block_until_ready(dnn_forward(x, params, compute_dtype=jnp.bfloat16))
    ref = dnn_reference(x, params)
    assert out.shape == (batch, output_dim), out.shape
    # bf16 MXU operands with f32 accumulation vs f32 reference -> loose tolerance.
    assert jnp.allclose(out, ref, rtol=2e-2, atol=1e-3), "Pallas mismatch (batch=512)"

    # Ragged batch: exercises pl.cdiv grid + output block clipping (no pad/slice).
    x2 = x[:300]
    out2 = jax.block_until_ready(dnn_forward(x2, params, compute_dtype=jnp.bfloat16))
    ref2 = dnn_reference(x2, params)
    assert out2.shape == (300, output_dim), out2.shape
    assert jnp.allclose(out2, ref2, rtol=2e-2, atol=1e-3), "Pallas mismatch (batch=300)"

    print("KERNEL_OK")
</pallas_src>

<mosaic_0001>
module attributes {stable_mosaic.version = 11 : i64} {
  func.func @mlp_kernel(%arg0: i32, %arg1: memref<512x64xf32, #tpu.memory_space<vmem>>, %arg2: memref<64x128xbf16, #tpu.memory_space<vmem>>, %arg3: memref<1x128xf32, #tpu.memory_space<vmem>>, %arg4: memref<128x128xbf16, #tpu.memory_space<vmem>>, %arg5: memref<1x128xf32, #tpu.memory_space<vmem>>, %arg6: memref<1x128xbf16, #tpu.memory_space<vmem>>, %arg7: memref<1x1xf32, #tpu.memory_space<vmem>>, %arg8: memref<1x512xf32, #tpu.memory_space<vmem>>) attributes {dimension_semantics = [#tpu.dimension_semantics<parallel>], iteration_bounds = array<i64: 1>, scalar_prefetch = 0 : i64, scratch_operands = 0 : i64, tpu.core_type = #tpu.core_type<tc>, window_params = [{transform_indices = @transform_0, window_bounds = array<i64: 512, 64>}, {pipeline_mode = #tpu.pipeline_mode<synchronous>, transform_indices = @transform_1, window_bounds = array<i64: 64, 128>}, {pipeline_mode = #tpu.pipeline_mode<synchronous>, transform_indices = @transform_2, window_bounds = array<i64: 1, 128>}, {pipeline_mode = #tpu.pipeline_mode<synchronous>, transform_indices = @transform_3, window_bounds = array<i64: 128, 128>}, {pipeline_mode = #tpu.pipeline_mode<synchronous>, transform_indices = @transform_4, window_bounds = array<i64: 1, 128>}, {pipeline_mode = #tpu.pipeline_mode<synchronous>, transform_indices = @transform_5, window_bounds = array<i64: 1, 128>}, {pipeline_mode = #tpu.pipeline_mode<synchronous>, transform_indices = @transform_6, window_bounds = array<i64: 1, 1>}, {transform_indices = @transform_7, window_bounds = array<i64: 1, 512>}]} {
    %c0 = arith.constant 0 : index
    %c0_0 = arith.constant 0 : index
    %0 = vector.load %arg1[%c0, %c0_0] : memref<512x64xf32, #tpu.memory_space<vmem>>, vector<512x64xf32>
    %1 = arith.truncf %0 : vector<512x64xf32> to vector<512x64xbf16>
    %c0_1 = arith.constant 0 : index
    %c0_2 = arith.constant 0 : index
    %2 = vector.load %arg2[%c0_1, %c0_2] : memref<64x128xbf16, #tpu.memory_space<vmem>>, vector<64x128xbf16>
    %cst = arith.constant dense<0.000000e+00> : vector<512x128xf32>
    %3 = tpu.matmul %1, %2, %cst {dimension_numbers = #tpu.dot_dimension_numbers<[1], [0], [0], [1], [0, 0, 1, 1], [], []>} : vector<512x64xbf16>, vector<64x128xbf16>, vector<512x128xf32> -> vector<512x128xf32>
    %c0_3 = arith.constant 0 : index
    %c0_4 = arith.constant 0 : index
    %4 = vector.load %arg3[%c0_3, %c0_4] : memref<1x128xf32, #tpu.memory_space<vmem>>, vector<1x128xf32>
    %5 = vector.broadcast %4 : vector<1x128xf32> to vector<512x128xf32>
    %6 = arith.addf %3, %5 : vector<512x128xf32>
    %cst_5 = arith.constant 0.000000e+00 : f32
    %7 = vector.broadcast %cst_5 : f32 to vector<512x128xf32>
    %8 = arith.maximumf %6, %7 : vector<512x128xf32>
    %9 = arith.truncf %8 : vector<512x128xf32> to vector<512x128xbf16>
    %c0_6 = arith.constant 0 : index
    %c0_7 = arith.constant 0 : index
    %10 = vector.load %arg4[%c0_6, %c0_7] : memref<128x128xbf16, #tpu.memory_space<vmem>>, vector<128x128xbf16>
    %cst_8 = arith.constant dense<0.000000e+00> : vector<512x128xf32>
    %11 = tpu.matmul %9, %10, %cst_8 {dimension_numbers = #tpu.dot_dimension_numbers<[1], [0], [0], [1], [0, 0, 1, 1], [], []>} : vector<512x128xbf16>, vector<128x128xbf16>, vector<512x128xf32> -> vector<512x128xf32>
    %c0_9 = arith.constant 0 : index
    %c0_10 = arith.constant 0 : index
    %12 = vector.load %arg5[%c0_9, %c0_10] : memref<1x128xf32, #tpu.memory_space<vmem>>, vector<1x128xf32>
    %13 = vector.broadcast %12 : vector<1x128xf32> to vector<512x128xf32>
    %14 = arith.addf %11, %13 : vector<512x128xf32>
    %cst_11 = arith.constant 0.000000e+00 : f32
    %15 = vector.broadcast %cst_11 : f32 to vector<512x128xf32>
    %16 = arith.maximumf %14, %15 : vector<512x128xf32>
    %c0_12 = arith.constant 0 : index
    %c0_13 = arith.constant 0 : index
    %17 = vector.load %arg6[%c0_12, %c0_13] : memref<1x128xbf16, #tpu.memory_space<vmem>>, vector<1x128xbf16>
    %18 = arith.truncf %16 : vector<512x128xf32> to vector<512x128xbf16>
    %cst_14 = arith.constant dense<0.000000e+00> : vector<1x512xf32>
    %19 = tpu.matmul %17, %18, %cst_14 {dimension_numbers = #tpu.dot_dimension_numbers<[1], [1], [0], [0], [0, 0, 1, 0], [], []>} : vector<1x128xbf16>, vector<512x128xbf16>, vector<1x512xf32> -> vector<1x512xf32>
    %c0_15 = arith.constant 0 : index
    %c0_16 = arith.constant 0 : index
    %20 = vector.load %arg7[%c0_15, %c0_16] : memref<1x1xf32, #tpu.memory_space<vmem>>, vector<1x1xf32>
    %21 = vector.broadcast %20 : vector<1x1xf32> to vector<1x512xf32>
    %22 = arith.addf %19, %21 : vector<1x512xf32>
    %c0_17 = arith.constant 0 : index
    %c0_18 = arith.constant 0 : index
    %23 = vector.load %arg8[%c0_17, %c0_18] : memref<1x512xf32, #tpu.memory_space<vmem>>, vector<1x512xf32>
    tpu.vector_store %arg8[%c0_17, %c0_18], %22 {strides = array<i32>} : memref<1x512xf32, #tpu.memory_space<vmem>>, vector<1x512xf32>,
    return
  }
  func.func @transform_0(%arg0: i32) -> (i32, i32) {
    %c0_i32 = arith.constant 0 : i32
    %c0_i32_0 = arith.constant 0 : i32
    return %arg0, %c0_i32 : i32, i32
  }
  func.func @transform_1(%arg0: i32) -> (i32, i32) {
    %c0_i32 = arith.constant 0 : i32
    %c0_i32_0 = arith.constant 0 : i32
    %c0_i32_1 = arith.constant 0 : i32
    return %c0_i32, %c0_i32_0 : i32, i32
  }
  func.func @transform_2(%arg0: i32) -> (i32, i32) {
    %c0_i32 = arith.constant 0 : i32
    %c0_i32_0 = arith.constant 0 : i32
    %c0_i32_1 = arith.constant 0 : i32
    return %c0_i32, %c0_i32_0 : i32, i32
  }
  func.func @transform_3(%arg0: i32) -> (i32, i32) {
    %c0_i32 = arith.constant 0 : i32
    %c0_i32_0 = arith.constant 0 : i32
    %c0_i32_1 = arith.constant 0 : i32
    return %c0_i32, %c0_i32_0 : i32, i32
  }
  func.func @transform_4(%arg0: i32) -> (i32, i32) {
    %c0_i32 = arith.constant 0 : i32
    %c0_i32_0 = arith.constant 0 : i32
    %c0_i32_1 = arith.constant 0 : i32
    return %c0_i32, %c0_i32_0 : i32, i32
  }
  func.func @transform_5(%arg0: i32) -> (i32, i32) {
    %c0_i32 = arith.constant 0 : i32
    %c0_i32_0 = arith.constant 0 : i32
    %c0_i32_1 = arith.constant 0 : i32
    return %c0_i32, %c0_i32_0 : i32, i32
  }
  func.func @transform_6(%arg0: i32) -> (i32, i32) {
    %c0_i32 = arith.constant 0 : i32
    %c0_i32_0 = arith.constant 0 : i32
    %c0_i32_1 = arith.constant 0 : i32
    return %c0_i32, %c0_i32_0 : i32, i32
  }
  func.func @transform_7(%arg0: i32) -> (i32, i32) {
    %c0_i32 = arith.constant 0 : i32
    %c0_i32_0 = arith.constant 0 : i32
    return %c0_i32, %arg0 : i32, i32
  }
}

</mosaic_0001>

<llo_original>
// kernel: tpu_custom_call.1
$region0: #{tpu_custom_call.1}
  #allocation0 [shape = 'u32[]', space=smem, size = 0x4, offset = 0x4, fixed_abs, tag = 'smem constant byte address 0x4 - core index']
  #allocation1 [shape = 'u32[72,128]{1,0:T(1,128)}', space=vmem, size = 0x9000, scoped, tag = 'internal scratch']
  #allocation2 [shape = 'f32[1,1]{1,0:T(1,128)S(1)}', space=vmem, size = 0x200, scoped, tag = 'scoped memory for tpu_custom_call.1']
  %s0 = inlined_call_operand.vmem [shape: f32[512,64], index: 0, kind: input, shape index: {}]
  %s1 = inlined_call_operand.vmem [shape: bf16[64,128], index: 1, kind: input, shape index: {}]
  %s2 = inlined_call_operand.vmem [shape: f32[1,128], index: 2, kind: input, shape index: {}]
  %s3 = inlined_call_operand.vmem [shape: bf16[128,128], index: 3, kind: input, shape index: {}]
  %s4 = inlined_call_operand.vmem [shape: f32[1,128], index: 4, kind: input, shape index: {}]
  %s5 = inlined_call_operand.vmem [shape: bf16[1,128], index: 5, kind: input, shape index: {}]
  %s6 = inlined_call_operand.<no memory space> [shape: f32[1,1], index: 6, kind: input, shape index: {}]
  %s7 = inlined_call_operand.hbm [shape: f32[1,512], index: 7, kind: output, shape index: {}]
  %s8 = sld [smem:[#allocation0]]
  $region38: #{tpu_custom_call.1} parent=0
    _
  %s10 = ssub.s32 1, %s8
  %s11 = scalar_select 0, %s10, %s8
  %v12 = vstv %s6
  %13 = vst [vmem:[#allocation2] sm:$0x1] %v12
  $region1: #{tpu_custom_call.1} parent=0
    #allocation3 [shape = 'u8[2048]{0}', space=vmem, size = 0x800, scoped, tag = 'output window, operand 0, single buffered']
    #allocation4 [shape = 's32[1]{0}', space=sflag, size = 0x4, scoped, tag = 'scoped memory for tpu_custom_call.1']
    %14 = vsyncpa [#allocation4], 0
    // Predicated region
    $region2: #{tpu_custom_call.1} parent=1 // pred_check
      _
    $region3: #{tpu_custom_call.1} parent=1 // pred_check_branch
      %16 = sbr.rel (0) target = $region5
    $region4: #{tpu_custom_call.1} parent=1 // pred_region
      _
    $region5: #{tpu_custom_call.1} parent=1 // pred_fallthru
      _
    // Predicated region
    $region6: #{tpu_custom_call.1} parent=1 // pred_check
      _
    $region7: #{tpu_custom_call.1} parent=1 // pred_check_branch
      %18 = sbr.rel (0) target = $region9
    $region8: #{tpu_custom_call.1} parent=1 // pred_region
      _
    $region9: #{tpu_custom_call.1} parent=1 // pred_fallthru
      _
    // Predicated region
    $region10: #{tpu_custom_call.1} parent=1 // pred_check
      _
    $region11: #{tpu_custom_call.1} parent=1 // pred_check_branch
      %20 = sbr.rel (0) target = $region13
    $region12: #{tpu_custom_call.1} parent=1 // pred_region
      _
    $region13: #{tpu_custom_call.1} parent=1 // pred_fallthru
      _
    // Predicated region
    $region14: #{tpu_custom_call.1} parent=1 // pred_check
      _
    $region15: #{tpu_custom_call.1} parent=1 // pred_check_branch
      %22 = sbr.rel (0) target = $region17
    $region16: #{tpu_custom_call.1} parent=1 // pred_region
      _
    $region17: #{tpu_custom_call.1} parent=1 // pred_fallthru
      _
    // Predicated region
    $region18: #{tpu_custom_call.1} parent=1 // pred_check
      _
    $region19: #{tpu_custom_call.1} parent=1 // pred_check_branch
      %24 = sbr.rel (0) target = $region21
    $region20: #{tpu_custom_call.1} parent=1 // pred_region
      _
    $region21: #{tpu_custom_call.1} parent=1 // pred_fallthru
      _
    // Predicated region
    $region22: #{tpu_custom_call.1} parent=1 // pred_check
      _
    $region23: #{tpu_custom_call.1} parent=1 // pred_check_branch
      %26 = sbr.rel (0) target = $region25
    $region24: #{tpu_custom_call.1} parent=1 // pred_region
      _
    $region25: #{tpu_custom_call.1} parent=1 // pred_fallthru
      _
    // Predicated region
    $region26: #{tpu_custom_call.1} parent=1 // pred_check
      _
    $region27: #{tpu_custom_call.1} parent=1 // pred_check_branch
      %28 = sbr.rel (0) target = $region29
    $region28: #{tpu_custom_call.1} parent=1 // pred_region
      _
    $region29: #{tpu_custom_call.1} parent=1 // pred_fallthru
      _
    %v30 = vld [vmem:[%s0] sm:$0xff]
    %v31 = vld [vmem:[%s0 + $0x8] sm:$0xff]
    %v32 = vld [vmem:[%s0 + $0x10] sm:$0xff]
    %v33 = vld [vmem:[%s0 + $0x18] sm:$0xff]
    %v34 = vld [vmem:[%s0 + $0x20] sm:$0xff]
    %v35 = vld [vmem:[%s0 + $0x28] sm:$0xff]
    %v36 = vld [vmem:[%s0 + $0x30] sm:$0xff]
    %v37 = vld [vmem:[%s0 + $0x38] sm:$0xff]
    %v38 = vld [vmem:[%s0 + $0x40] sm:$0xff]
    %v39 = vld [vmem:[%s0 + $0x48] sm:$0xff]
    %v40 = vld [vmem:[%s0 + $0x50] sm:$0xff]
    %v41 = vld [vmem:[%s0 + $0x58] sm:$0xff]
    %v42 = vld [vmem:[%s0 + $0x60] sm:$0xff]
    %v43 = vld [vmem:[%s0 + $0x68] sm:$0xff]
    %v44 = vld [vmem:[%s0 + $0x70] sm:$0xff]
    %v45 = vld [vmem:[%s0 + $0x78] sm:$0xff]
    %v46 = vld [vmem:[%s0 + $0x80] sm:$0xff]
    %v47 = vld [vmem:[%s0 + $0x88] sm:$0xff]
    %v48 = vld [vmem:[%s0 + $0x90] sm:$0xff]
    %v49 = vld [vmem:[%s0 + $0x98] sm:$0xff]
    %v50 = vld [vmem:[%s0 + $0xa0] sm:$0xff]
    %v51 = vld [vmem:[%s0 + $0xa8] sm:$0xff]
    %v52 = vld [vmem:[%s0 + $0xb0] sm:$0xff]
    %v53 = vld [vmem:[%s0 + $0xb8] sm:$0xff]
    %v54 = vld [vmem:[%s0 + $0xc0] sm:$0xff]
    %v55 = vld [vmem:[%s0 + $0xc8] sm:$0xff]
    %v56 = vld [vmem:[%s0 + $0xd0] sm:$0xff]
    %v57 = vld [vmem:[%s0 + $0xd8] sm:$0xff]
    %v58 = vld [vmem:[%s0 + $0xe0] sm:$0xff]
    %v59 = vld [vmem:[%s0 + $0xe8] sm:$0xff]
    %v60 = vld [vmem:[%s0 + $0xf0] sm:$0xff]
    %v61 = vld [vmem:[%s0 + $0xf8] sm:$0xff]
    %v62 = vld [vmem:[%s0 + $0x100] sm:$0xff]
    %v63 = vld [vmem:[%s0 + $0x108] sm:$0xff]
    %v64 = vld [vmem:[%s0 + $0x110] sm:$0xff]
    %v65 = vld [vmem:[%s0 + $0x118] sm:$0xff]
    %v66 = vld [vmem:[%s0 + $0x120] sm:$0xff]
    %v67 = vld [vmem:[%s0 + $0x128] sm:$0xff]
    %v68 = vld [vmem:[%s0 + $0x130] sm:$0xff]
    %v69 = vld [vmem:[%s0 + $0x138] sm:$0xff]
    %v70 = vld [vmem:[%s0 + $0x140] sm:$0xff]
    %v71 = vld [vmem:[%s0 + $0x148] sm:$0xff]
    %v72 = vld [vmem:[%s0 + $0x150] sm:$0xff]
    %v73 = vld [vmem:[%s0 + $0x158] sm:$0xff]
    %v74 = vld [vmem:[%s0 + $0x160] sm:$0xff]
    %v75 = vld [vmem:[%s0 + $0x168] sm:$0xff]
    %v76 = vld [vmem:[%s0 + $0x170] sm:$0xff]
    %v77 = vld [vmem:[%s0 + $0x178] sm:$0xff]
    %v78 = vld [vmem:[%s0 + $0x180] sm:$0xff]
    %v79 = vld [vmem:[%s0 + $0x188] sm:$0xff]
    %v80 = vld [vmem:[%s0 + $0x190] sm:$0xff]
    %v81 = vld [vmem:[%s0 + $0x198] sm:$0xff]
    %v82 = vld [vmem:[%s0 + $0x1a0] sm:$0xff]
    %v83 = vld [vmem:[%s0 + $0x1a8] sm:$0xff]
    %v84 = vld [vmem:[%s0 + $0x1b0] sm:$0xff]
    %v85 = vld [vmem:[%s0 + $0x1b8] sm:$0xff]
    %v86 = vld [vmem:[%s0 + $0x1c0] sm:$0xff]
    %v87 = vld [vmem:[%s0 + $0x1c8] sm:$0xff]
    %v88 = vld [vmem:[%s0 + $0x1d0] sm:$0xff]
    %v89 = vld [vmem:[%s0 + $0x1d8] sm:$0xff]
    %v90 = vld [vmem:[%s0 + $0x1e0] sm:$0xff]
    %v91 = vld [vmem:[%s0 + $0x1e8] sm:$0xff]
    %v92 = vld [vmem:[%s0 + $0x1f0] sm:$0xff]
    %v93 = vld [vmem:[%s0 + $0x1f8] sm:$0xff]
    %v94 = vpack.c.bf16 %v31, %v30
    %v95 = vpack.c.bf16 %v33, %v32
    %v96 = vpack.c.bf16 %v35, %v34
    %v97 = vpack.c.bf16 %v37, %v36
    %v98 = vpack.c.bf16 %v39, %v38
    %v99 = vpack.c.bf16 %v41, %v40
    %v100 = vpack.c.bf16 %v43, %v42
    %v101 = vpack.c.bf16 %v45, %v44
    %v102 = vpack.c.bf16 %v47, %v46
    %v103 = vpack.c.bf16 %v49, %v48
    %v104 = vpack.c.bf16 %v51, %v50
    %v105 = vpack.c.bf16 %v53, %v52
    %v106 = vpack.c.bf16 %v55, %v54
    %v107 = vpack.c.bf16 %v57, %v56
    %v108 = vpack.c.bf16 %v59, %v58
    %v109 = vpack.c.bf16 %v61, %v60
    %v110 = vpack.c.bf16 %v63, %v62
    %v111 = vpack.c.bf16 %v65, %v64
    %v112 = vpack.c.bf16 %v67, %v66
    %v113 = vpack.c.bf16 %v69, %v68
    %v114 = vpack.c.bf16 %v71, %v70
    %v115 = vpack.c.bf16 %v73, %v72
    %v116 = vpack.c.bf16 %v75, %v74
    %v117 = vpack.c.bf16 %v77, %v76
    %v118 = vpack.c.bf16 %v79, %v78
    %v119 = vpack.c.bf16 %v81, %v80
    %v120 = vpack.c.bf16 %v83, %v82
    %v121 = vpack.c.bf16 %v85, %v84
    %v122 = vpack.c.bf16 %v87, %v86
    %v123 = vpack.c.bf16 %v89, %v88
    %v124 = vpack.c.bf16 %v91, %v90
    %v125 = vpack.c.bf16 %v93, %v92
    %v126 = vld [vmem:[%s1] sm:$0xf]
    %v127 = vld [vmem:[%s1 + $0x4] sm:$0xf]
    %v128 = vld [vmem:[%s1 + $0x8] sm:$0xf]
    %v129 = vld [vmem:[%s1 + $0xc] sm:$0xf]
    %v130 = vld [vmem:[%s1 + $0x10] sm:$0xf]
    %v131 = vld [vmem:[%s1 + $0x14] sm:$0xf]
    %v132 = vld [vmem:[%s1 + $0x18] sm:$0xf]
    %v133 = vld [vmem:[%s1 + $0x1c] sm:$0xf]
    %v134 = vld [vmem:[%s2] sm:$0x1]
    %v136 = vperm.slane %v134, 0
    %v146 = vunpack.c.l.b16 %v126
    %v147 = vunpack.c.l.b16 %v127
    %v148 = vunpack.c.l.b16 %v128
    %v149 = vunpack.c.l.b16 %v129
    %v150 = vunpack.c.l.b16 %v130
    %v151 = vunpack.c.l.b16 %v131
    %v152 = vunpack.c.l.b16 %v132
    %v153 = vunpack.c.l.b16 %v133
    %v154 = vpack.c.b16 %v147, %v146
    %v155 = vpack.c.b16 %v149, %v148
    %v156 = vpack.c.b16 %v151, %v150
    %v157 = vpack.c.b16 %v153, %v152
    %vm162 = vcmask 523264
    %v164 = vsel %vm162, %v94, 0
    %v167 = vsel %vm162, %v95, 0
    %v170 = vsel %vm162, %v96, 0
    %v173 = vsel %vm162, %v97, 0
    %v176 = vsel %vm162, %v98, 0
    %v179 = vsel %vm162, %v99, 0
    %v182 = vsel %vm162, %v100, 0
    %v185 = vsel %vm162, %v101, 0
    %v188 = vsel %vm162, %v102, 0
    %v191 = vsel %vm162, %v103, 0
    %v194 = vsel %vm162, %v104, 0
    %v197 = vsel %vm162, %v105, 0
    %v200 = vsel %vm162, %v106, 0
    %v203 = vsel %vm162, %v107, 0
    %v206 = vsel %vm162, %v108, 0
    %v209 = vsel %vm162, %v109, 0
    %v212 = vsel %vm162, %v110, 0
    %v215 = vsel %vm162, %v111, 0
    %v218 = vsel %vm162, %v112, 0
    %v221 = vsel %vm162, %v113, 0
    %v224 = vsel %vm162, %v114, 0
    %v227 = vsel %vm162, %v115, 0
    %v230 = vsel %vm162, %v116, 0
    %v233 = vsel %vm162, %v117, 0
    %v236 = vsel %vm162, %v118, 0
    %v239 = vsel %vm162, %v119, 0
    %v242 = vsel %vm162, %v120, 0
    %v245 = vsel %vm162, %v121, 0
    %v248 = vsel %vm162, %v122, 0
    %v251 = vsel %vm162, %v123, 0
    %v254 = vsel %vm162, %v124, 0
    %v257 = vsel %vm162, %v125, 0
    %259 = vmatpush.bf16.msra.mxu0 0
    %260 = vmatpush.bf16.msra.mxu0 0
    %261 = vmatpush.bf16.msra.mxu0 0
    %262 = vmatpush.bf16.msra.mxu0 0
    %263 = vmatpush.bf16.msra.mxu0 %v157
    %264 = vmatpush.bf16.msra.mxu0 %v156
    %265 = vmatpush.bf16.msra.mxu0 %v155
    %266 = vmatpush.bf16.msra.mxu0 %v154
    %267 = vmatmul.bf16.gmra.mxu0 %v164
    %v268 = vpop.f32.mrf.mxu0
    %v269 = vadd.f32 %v136, %v268
    %v270 = vpop.f32.mrf.mxu0
    %v271 = vadd.f32 %v136, %v270
    %272 = vmatmul.bf16.gmra.mxu0 %v167
    %v273 = vpop.f32.mrf.mxu0
    %v274 = vadd.f32 %v136, %v273
    %v275 = vpop.f32.mrf.mxu0
    %v276 = vadd.f32 %v136, %v275
    %277 = vmatmul.bf16.gmra.mxu0 %v170
    %v278 = vpop.f32.mrf.mxu0
    %v279 = vadd.f32 %v136, %v278
    %v280 = vpop.f32.mrf.mxu0
    %v281 = vadd.f32 %v136, %v280
    %282 = vmatmul.bf16.gmra.mxu0 %v173
    %v283 = vpop.f32.mrf.mxu0
    %v284 = vadd.f32 %v136, %v283
    %v285 = vpop.f32.mrf.mxu0
    %v286 = vadd.f32 %v136, %v285
    %287 = vmatmul.bf16.gmra.mxu0 %v176
    %v288 = vpop.f32.mrf.mxu0
    %v289 = vadd.f32 %v136, %v288
    %v290 = vpop.f32.mrf.mxu0
    %v291 = vadd.f32 %v136, %v290
    %292 = vmatmul.bf16.gmra.mxu0 %v179
    %v293 = vpop.f32.mrf.mxu0
    %v294 = vadd.f32 %v136, %v293
    %v295 = vpop.f32.mrf.mxu0
    %v296 = vadd.f32 %v136, %v295
    %297 = vmatmul.bf16.gmra.mxu0 %v182
    %v298 = vpop.f32.mrf.mxu0
    %v299 = vadd.f32 %v136, %v298
    %v300 = vpop.f32.mrf.mxu0
    %v301 = vadd.f32 %v136, %v300
    %302 = vmatmul.bf16.gmra.mxu0 %v185
    %v303 = vpop.f32.mrf.mxu0
    %v304 = vadd.f32 %v136, %v303
    %v305 = vpop.f32.mrf.mxu0
    %v306 = vadd.f32 %v136, %v305
    %307 = vmatmul.bf16.gmra.mxu0 %v188
    %v308 = vpop.f32.mrf.mxu0
    %v309 = vadd.f32 %v136, %v308
    %v310 = vpop.f32.mrf.mxu0
    %v311 = vadd.f32 %v136, %v310
    %312 = vmatmul.bf16.gmra.mxu0 %v191
    %v313 = vpop.f32.mrf.mxu0
    %v314 = vadd.f32 %v136, %v313
    %v315 = vpop.f32.mrf.mxu0
    %v316 = vadd.f32 %v136, %v315
    %317 = vmatmul.bf16.gmra.mxu0 %v194
    %v318 = vpop.f32.mrf.mxu0
    %v319 = vadd.f32 %v136, %v318
    %v320 = vpop.f32.mrf.mxu0
    %v321 = vadd.f32 %v136, %v320
    %322 = vmatmul.bf16.gmra.mxu0 %v197
    %v323 = vpop.f32.mrf.mxu0
    %v324 = vadd.f32 %v136, %v323
    %v325 = vpop.f32.mrf.mxu0
    %v326 = vadd.f32 %v136, %v325
    %327 = vmatmul.bf16.gmra.mxu0 %v200
    %v328 = vpop.f32.mrf.mxu0
    %v329 = vadd.f32 %v136, %v328
    %v330 = vpop.f32.mrf.mxu0
    %v331 = vadd.f32 %v136, %v330
    %332 = vmatmul.bf16.gmra.mxu0 %v203
    %v333 = vpop.f32.mrf.mxu0
    %v334 = vadd.f32 %v136, %v333
    %v335 = vpop.f32.mrf.mxu0
    %v336 = vadd.f32 %v136, %v335
    %337 = vmatmul.bf16.gmra.mxu0 %v206
    %v338 = vpop.f32.mrf.mxu0
    %v339 = vadd.f32 %v136, %v338
    %v340 = vpop.f32.mrf.mxu0
    %v341 = vadd.f32 %v136, %v340
    %342 = vmatmul.bf16.gmra.mxu0 %v209
    %v343 = vpop.f32.mrf.mxu0
    %v344 = vadd.f32 %v136, %v343
    %v345 = vpop.f32.mrf.mxu0
    %v346 = vadd.f32 %v136, %v345
    %347 = vmatmul.bf16.gmra.mxu0 %v212
    %v348 = vpop.f32.mrf.mxu0
    %v349 = vadd.f32 %v136, %v348
    %v350 = vpop.f32.mrf.mxu0
    %v351 = vadd.f32 %v136, %v350
    %352 = vmatmul.bf16.gmra.mxu0 %v215
    %v353 = vpop.f32.mrf.mxu0
    %v354 = vadd.f32 %v136, %v353
    %v355 = vpop.f32.mrf.mxu0
    %v356 = vadd.f32 %v136, %v355
    %357 = vmatmul.bf16.gmra.mxu0 %v218
    %v358 = vpop.f32.mrf.mxu0
    %v359 = vadd.f32 %v136, %v358
    %v360 = vpop.f32.mrf.mxu0
    %v361 = vadd.f32 %v136, %v360
    %362 = vmatmul.bf16.gmra.mxu0 %v221
    %v363 = vpop.f32.mrf.mxu0
    %v364 = vadd.f32 %v136, %v363
    %v365 = vpop.f32.mrf.mxu0
    %v366 = vadd.f32 %v136, %v365
    %367 = vmatmul.bf16.gmra.mxu0 %v224
    %v368 = vpop.f32.mrf.mxu0
    %v369 = vadd.f32 %v136, %v368
    %v370 = vpop.f32.mrf.mxu0
    %v371 = vadd.f32 %v136, %v370
    %372 = vmatmul.bf16.gmra.mxu0 %v227
    %v373 = vpop.f32.mrf.mxu0
    %v374 = vadd.f32 %v136, %v373
    %v375 = vpop.f32.mrf.mxu0
    %v376 = vadd.f32 %v136, %v375
    %377 = vmatmul.bf16.gmra.mxu0 %v230
    %v378 = vpop.f32.mrf.mxu0
    %v379 = vadd.f32 %v136, %v378
    %v380 = vpop.f32.mrf.mxu0
    %v381 = vadd.f32 %v136, %v380
    %382 = vmatmul.bf16.gmra.mxu0 %v233
    %v383 = vpop.f32.mrf.mxu0
    %v384 = vadd.f32 %v136, %v383
    %v385 = vpop.f32.mrf.mxu0
    %v386 = vadd.f32 %v136, %v385
    %387 = vmatmul.bf16.gmra.mxu0 %v236
    %v388 = vpop.f32.mrf.mxu0
    %v389 = vadd.f32 %v136, %v388
    %v390 = vpop.f32.mrf.mxu0
    %v391 = vadd.f32 %v136, %v390
    %392 = vmatmul.bf16.gmra.mxu0 %v239
    %v393 = vpop.f32.mrf.mxu0
    %v394 = vadd.f32 %v136, %v393
    %v395 = vpop.f32.mrf.mxu0
    %v396 = vadd.f32 %v136, %v395
    %397 = vmatmul.bf16.gmra.mxu0 %v242
    %v398 = vpop.f32.mrf.mxu0
    %v399 = vadd.f32 %v136, %v398
    %v400 = vpop.f32.mrf.mxu0
    %v401 = vadd.f32 %v136, %v400
    %402 = vmatmul.bf16.gmra.mxu0 %v245
    %v403 = vpop.f32.mrf.mxu0
    %v404 = vadd.f32 %v136, %v403
    %v405 = vpop.f32.mrf.mxu0
    %v406 = vadd.f32 %v136, %v405
    %407 = vmatmul.bf16.gmra.mxu0 %v248
    %v408 = vpop.f32.mrf.mxu0
    %v409 = vadd.f32 %v136, %v408
    %v410 = vpop.f32.mrf.mxu0
    %v411 = vadd.f32 %v136, %v410
    %412 = vmatmul.bf16.gmra.mxu0 %v251
    %v413 = vpop.f32.mrf.mxu0
    %v414 = vadd.f32 %v136, %v413
    %v415 = vpop.f32.mrf.mxu0
    %v416 = vadd.f32 %v136, %v415
    %417 = vmatmul.bf16.gmra.mxu0 %v254
    %v418 = vpop.f32.mrf.mxu0
    %v419 = vadd.f32 %v136, %v418
    %v420 = vpop.f32.mrf.mxu0
    %v421 = vadd.f32 %v136, %v420
    %422 = vmatmul.bf16.gmra.mxu0 %v257
    %v423 = vpop.f32.mrf.mxu0
    %v424 = vadd.f32 %v136, %v423
    %v425 = vpop.f32.mrf.mxu0
    %v426 = vadd.f32 %v136, %v425
    %427 = vdwg.mxu0
    %v428 = vmax.f32 %v269, 0.0
    %v429 = vmax.f32 %v271, 0.0
    %v430 = vmax.f32 %v274, 0.0
    %v431 = vmax.f32 %v276, 0.0
    %v432 = vmax.f32 %v279, 0.0
    %v433 = vmax.f32 %v281, 0.0
    %v434 = vmax.f32 %v284, 0.0
    %v435 = vmax.f32 %v286, 0.0
    %v436 = vmax.f32 %v289, 0.0
    %v437 = vmax.f32 %v291, 0.0
    %v438 = vmax.f32 %v294, 0.0
    %v439 = vmax.f32 %v296, 0.0
    %v440 = vmax.f32 %v299, 0.0
    %v441 = vmax.f32 %v301, 0.0
    %v442 = vmax.f32 %v304, 0.0
    %v443 = vmax.f32 %v306, 0.0
    %v444 = vmax.f32 %v309, 0.0
    %v445 = vmax.f32 %v311, 0.0
    %v446 = vmax.f32 %v314, 0.0
    %v447 = vmax.f32 %v316, 0.0
    %v448 = vmax.f32 %v319, 0.0
    %v449 = vmax.f32 %v321, 0.0
    %v450 = vmax.f32 %v324, 0.0
    %v451 = vmax.f32 %v326, 0.0
    %v452 = vmax.f32 %v329, 0.0
    %v453 = vmax.f32 %v331, 0.0
    %v454 = vmax.f32 %v334, 0.0
    %v455 = vmax.f32 %v336, 0.0
    %v456 = vmax.f32 %v339, 0.0
    %v457 = vmax.f32 %v341, 0.0
    %v458 = vmax.f32 %v344, 0.0
    %v459 = vmax.f32 %v346, 0.0
    %v460 = vmax.f32 %v349, 0.0
    %v461 = vmax.f32 %v351, 0.0
    %v462 = vmax.f32 %v354, 0.0
    %v463 = vmax.f32 %v356, 0.0
    %v464 = vmax.f32 %v359, 0.0
    %v465 = vmax.f32 %v361, 0.0
    %v466 = vmax.f32 %v364, 0.0
    %v467 = vmax.f32 %v366, 0.0
    %v468 = vmax.f32 %v369, 0.0
    %v469 = vmax.f32 %v371, 0.0
    %v470 = vmax.f32 %v374, 0.0
    %v471 = vmax.f32 %v376, 0.0
    %v472 = vmax.f32 %v379, 0.0
    %v473 = vmax.f32 %v381, 0.0
    %v474 = vmax.f32 %v384, 0.0
    %v475 = vmax.f32 %v386, 0.0
    %v476 = vmax.f32 %v389, 0.0
    %v477 = vmax.f32 %v391, 0.0
    %v478 = vmax.f32 %v394, 0.0
    %v479 = vmax.f32 %v396, 0.0
    %v480 = vmax.f32 %v399, 0.0
    %v481 = vmax.f32 %v401, 0.0
    %v482 = vmax.f32 %v404, 0.0
    %v483 = vmax.f32 %v406, 0.0
    %v484 = vmax.f32 %v409, 0.0
    %v485 = vmax.f32 %v411, 0.0
    %v486 = vmax.f32 %v414, 0.0
    %v487 = vmax.f32 %v416, 0.0
    %v488 = vmax.f32 %v419, 0.0
    %v489 = vmax.f32 %v421, 0.0
    %v490 = vmax.f32 %v424, 0.0
    %v491 = vmax.f32 %v426, 0.0
    %v492 = vpack.c.bf16 %v429, %v428
    %v493 = vpack.c.bf16 %v431, %v430
    %v494 = vpack.c.bf16 %v433, %v432
    %v495 = vpack.c.bf16 %v435, %v434
    %v496 = vpack.c.bf16 %v437, %v436
    %v497 = vpack.c.bf16 %v439, %v438
    %v498 = vpack.c.bf16 %v441, %v440
    %v499 = vpack.c.bf16 %v443, %v442
    %v500 = vpack.c.bf16 %v445, %v444
    %v501 = vpack.c.bf16 %v447, %v446
    %v502 = vpack.c.bf16 %v449, %v448
    %v503 = vpack.c.bf16 %v451, %v450
    %v504 = vpack.c.bf16 %v453, %v452
    %v505 = vpack.c.bf16 %v455, %v454
    %v506 = vpack.c.bf16 %v457, %v456
    %v507 = vpack.c.bf16 %v459, %v458
    %v508 = vpack.c.bf16 %v461, %v460
    %v509 = vpack.c.bf16 %v463, %v462
    %v510 = vpack.c.bf16 %v465, %v464
    %v511 = vpack.c.bf16 %v467, %v466
    %v512 = vpack.c.bf16 %v469, %v468
    %v513 = vpack.c.bf16 %v471, %v470
    %v514 = vpack.c.bf16 %v473, %v472
    %v515 = vpack.c.bf16 %v475, %v474
    %v516 = vpack.c.bf16 %v477, %v476
    %v517 = vpack.c.bf16 %v479, %v478
    %v518 = vpack.c.bf16 %v481, %v480
    %v519 = vpack.c.bf16 %v483, %v482
    %v520 = vpack.c.bf16 %v485, %v484
    %v521 = vpack.c.bf16 %v487, %v486
    %v522 = vpack.c.bf16 %v489, %v488
    %v523 = vpack.c.bf16 %v491, %v490
    %v524 = vld [vmem:[%s3] sm:$0xf]
    %v525 = vld [vmem:[%s3 + $0x4] sm:$0xf]
    %v526 = vld [vmem:[%s3 + $0x8] sm:$0xf]
    %v527 = vld [vmem:[%s3 + $0xc] sm:$0xf]
    %v528 = vld [vmem:[%s3 + $0x10] sm:$0xf]
    %v529 = vld [vmem:[%s3 + $0x14] sm:$0xf]
    %v530 = vld [vmem:[%s3 + $0x18] sm:$0xf]
    %v531 = vld [vmem:[%s3 + $0x1c] sm:$0xf]
    %v532 = vld [vmem:[%s3 + $0x20] sm:$0xf]
    %v533 = vld [vmem:[%s3 + $0x24] sm:$0xf]
    %v534 = vld [vmem:[%s3 + $0x28] sm:$0xf]
    %v535 = vld [vmem:[%s3 + $0x2c] sm:$0xf]
    %v536 = vld [vmem:[%s3 + $0x30] sm:$0xf]
    %v537 = vld [vmem:[%s3 + $0x34] sm:$0xf]
    %v538 = vld [vmem:[%s3 + $0x38] sm:$0xf]
    %v539 = vld [vmem:[%s3 + $0x3c] sm:$0xf]
    %v540 = vld [vmem:[%s4] sm:$0x1]
    %v542 = vperm.slane %v540, 0
    %v560 = vunpack.c.l.b16 %v524
    %v561 = vunpack.c.l.b16 %v525
    %v562 = vunpack.c.l.b16 %v526
    %v563 = vunpack.c.l.b16 %v527
    %v564 = vunpack.c.l.b16 %v528
    %v565 = vunpack.c.l.b16 %v529
    %v566 = vunpack.c.l.b16 %v530
    %v567 = vunpack.c.l.b16 %v531
    %v568 = vunpack.c.l.b16 %v532
    %v569 = vunpack.c.l.b16 %v533
    %v570 = vunpack.c.l.b16 %v534
    %v571 = vunpack.c.l.b16 %v535
    %v572 = vunpack.c.l.b16 %v536
    %v573 = vunpack.c.l.b16 %v537
    %v574 = vunpack.c.l.b16 %v538
    %v575 = vunpack.c.l.b16 %v539
    %v576 = vpack.c.b16 %v561, %v560
    %v577 = vpack.c.b16 %v563, %v562
    %v578 = vpack.c.b16 %v565, %v564
    %v579 = vpack.c.b16 %v567, %v566
    %v580 = vpack.c.b16 %v569, %v568
    %v581 = vpack.c.b16 %v571, %v570
    %v582 = vpack.c.b16 %v573, %v572
    %v583 = vpack.c.b16 %v575, %v574
    %592 = vmatpush.bf16.msra.mxu0 %v583
    %593 = vmatpush.bf16.msra.mxu0 %v582
    %594 = vmatpush.bf16.msra.mxu0 %v581
    %595 = vmatpush.bf16.msra.mxu0 %v580
    %596 = vmatpush.bf16.msra.mxu0 %v579
    %597 = vmatpush.bf16.msra.mxu0 %v578
    %598 = vmatpush.bf16.msra.mxu0 %v577
    %599 = vmatpush.bf16.msra.mxu0 %v576
    %600 = vmatmul.bf16.gmra.mxu0 %v492
    %v601 = vpop.f32.mrf.mxu0
    %v602 = vadd.f32 %v542, %v601
    %v603 = vpop.f32.mrf.mxu0
    %v604 = vadd.f32 %v542, %v603
    %605 = vmatmul.bf16.gmra.mxu0 %v493
    %v606 = vpop.f32.mrf.mxu0
    %v607 = vadd.f32 %v542, %v606
    %v608 = vpop.f32.mrf.mxu0
    %v609 = vadd.f32 %v542, %v608
    %610 = vmatmul.bf16.gmra.mxu0 %v494
    %v611 = vpop.f32.mrf.mxu0
    %v612 = vadd.f32 %v542, %v611
    %v613 = vpop.f32.mrf.mxu0
    %v614 = vadd.f32 %v542, %v613
    %615 = vmatmul.bf16.gmra.mxu0 %v495
    %v616 = vpop.f32.mrf.mxu0
    %v617 = vadd.f32 %v542, %v616
    %v618 = vpop.f32.mrf.mxu0
    %v619 = vadd.f32 %v542, %v618
    %620 = vmatmul.bf16.gmra.mxu0 %v496
    %v621 = vpop.f32.mrf.mxu0
    %v622 = vadd.f32 %v542, %v621
    %v623 = vpop.f32.mrf.mxu0
    %v624 = vadd.f32 %v542, %v623
    %625 = vmatmul.bf16.gmra.mxu0 %v497
    %v626 = vpop.f32.mrf.mxu0
    %v627 = vadd.f32 %v542, %v626
    %v628 = vpop.f32.mrf.mxu0
    %v629 = vadd.f32 %v542, %v628
    %630 = vmatmul.bf16.gmra.mxu0 %v498
    %v631 = vpop.f32.mrf.mxu0
    %v632 = vadd.f32 %v542, %v631
    %v633 = vpop.f32.mrf.mxu0
    %v634 = vadd.f32 %v542, %v633
    %635 = vmatmul.bf16.gmra.mxu0 %v499
    %v636 = vpop.f32.mrf.mxu0
    %v637 = vadd.f32 %v542, %v636
    %v638 = vpop.f32.mrf.mxu0
    %v639 = vadd.f32 %v542, %v638
    %640 = vmatmul.bf16.gmra.mxu0 %v500
    %v641 = vpop.f32.mrf.mxu0
    %v642 = vadd.f32 %v542, %v641
    %v643 = vpop.f32.mrf.mxu0
    %v644 = vadd.f32 %v542, %v643
    %645 = vmatmul.bf16.gmra.mxu0 %v501
    %v646 = vpop.f32.mrf.mxu0
    %v647 = vadd.f32 %v542, %v646
    %v648 = vpop.f32.mrf.mxu0
    %v649 = vadd.f32 %v542, %v648
    %650 = vmatmul.bf16.gmra.mxu0 %v502
    %v651 = vpop.f32.mrf.mxu0
    %v652 = vadd.f32 %v542, %v651
    %v653 = vpop.f32.mrf.mxu0
    %v654 = vadd.f32 %v542, %v653
    %655 = vmatmul.bf16.gmra.mxu0 %v503
    %v656 = vpop.f32.mrf.mxu0
    %v657 = vadd.f32 %v542, %v656
    %v658 = vpop.f32.mrf.mxu0
    %v659 = vadd.f32 %v542, %v658
    %660 = vmatmul.bf16.gmra.mxu0 %v504
    %v661 = vpop.f32.mrf.mxu0
    %v662 = vadd.f32 %v542, %v661
    %v663 = vpop.f32.mrf.mxu0
    %v664 = vadd.f32 %v542, %v663
    %665 = vmatmul.bf16.gmra.mxu0 %v505
    %v666 = vpop.f32.mrf.mxu0
    %v667 = vadd.f32 %v542, %v666
    %v668 = vpop.f32.mrf.mxu0
    %v669 = vadd.f32 %v542, %v668
    %670 = vmatmul.bf16.gmra.mxu0 %v506
    %v671 = vpop.f32.mrf.mxu0
    %v672 = vadd.f32 %v542, %v671
    %v673 = vpop.f32.mrf.mxu0
    %v674 = vadd.f32 %v542, %v673
    %675 = vmatmul.bf16.gmra.mxu0 %v507
    %v676 = vpop.f32.mrf.mxu0
    %v677 = vadd.f32 %v542, %v676
    %v678 = vpop.f32.mrf.mxu0
    %v679 = vadd.f32 %v542, %v678
    %680 = vmatmul.bf16.gmra.mxu0 %v508
    %v681 = vpop.f32.mrf.mxu0
    %v682 = vadd.f32 %v542, %v681
    %v683 = vpop.f32.mrf.mxu0
    %v684 = vadd.f32 %v542, %v683
    %685 = vmatmul.bf16.gmra.mxu0 %v509
    %v686 = vpop.f32.mrf.mxu0
    %v687 = vadd.f32 %v542, %v686
    %v688 = vpop.f32.mrf.mxu0
    %v689 = vadd.f32 %v542, %v688
    %690 = vmatmul.bf16.gmra.mxu0 %v510
    %v691 = vpop.f32.mrf.mxu0
    %v692 = vadd.f32 %v542, %v691
    %v693 = vpop.f32.mrf.mxu0
    %v694 = vadd.f32 %v542, %v693
    %695 = vmatmul.bf16.gmra.mxu0 %v511
    %v696 = vpop.f32.mrf.mxu0
    %v697 = vadd.f32 %v542, %v696
    %v698 = vpop.f32.mrf.mxu0
    %v699 = vadd.f32 %v542, %v698
    %700 = vmatmul.bf16.gmra.mxu0 %v512
    %v701 = vpop.f32.mrf.mxu0
    %v702 = vadd.f32 %v542, %v701
    %v703 = vpop.f32.mrf.mxu0
    %v704 = vadd.f32 %v542, %v703
    %705 = vmatmul.bf16.gmra.mxu0 %v513
    %v706 = vpop.f32.mrf.mxu0
    %v707 = vadd.f32 %v542, %v706
    %v708 = vpop.f32.mrf.mxu0
    %v709 = vadd.f32 %v542, %v708
    %710 = vmatmul.bf16.gmra.mxu0 %v514
    %v711 = vpop.f32.mrf.mxu0
    %v712 = vadd.f32 %v542, %v711
    %v713 = vpop.f32.mrf.mxu0
    %v714 = vadd.f32 %v542, %v713
    %715 = vmatmul.bf16.gmra.mxu0 %v515
    %v716 = vpop.f32.mrf.mxu0
    %v717 = vadd.f32 %v542, %v716
    %v718 = vpop.f32.mrf.mxu0
    %v719 = vadd.f32 %v542, %v718
    %720 = vmatmul.bf16.gmra.mxu0 %v516
    %v721 = vpop.f32.mrf.mxu0
    %v722 = vadd.f32 %v542, %v721
    %v723 = vpop.f32.mrf.mxu0
    %v724 = vadd.f32 %v542, %v723
    %725 = vmatmul.bf16.gmra.mxu0 %v517
    %v726 = vpop.f32.mrf.mxu0
    %v727 = vadd.f32 %v542, %v726
    %v728 = vpop.f32.mrf.mxu0
    %v729 = vadd.f32 %v542, %v728
    %730 = vmatmul.bf16.gmra.mxu0 %v518
    %v731 = vpop.f32.mrf.mxu0
    %v732 = vadd.f32 %v542, %v731
    %v733 = vpop.f32.mrf.mxu0
    %v734 = vadd.f32 %v542, %v733
    %735 = vmatmul.bf16.gmra.mxu0 %v519
    %v736 = vpop.f32.mrf.mxu0
    %v737 = vadd.f32 %v542, %v736
    %v738 = vpop.f32.mrf.mxu0
    %v739 = vadd.f32 %v542, %v738
    %740 = vmatmul.bf16.gmra.mxu0 %v520
    %v741 = vpop.f32.mrf.mxu0
    %v742 = vadd.f32 %v542, %v741
    %v743 = vpop.f32.mrf.mxu0
    %v744 = vadd.f32 %v542, %v743
    %745 = vmatmul.bf16.gmra.mxu0 %v521
    %v746 = vpop.f32.mrf.mxu0
    %v747 = vadd.f32 %v542, %v746
    %v748 = vpop.f32.mrf.mxu0
    %v749 = vadd.f32 %v542, %v748
    %750 = vmatmul.bf16.gmra.mxu0 %v522
    %v751 = vpop.f32.mrf.mxu0
    %v752 = vadd.f32 %v542, %v751
    %v753 = vpop.f32.mrf.mxu0
    %v754 = vadd.f32 %v542, %v753
    %755 = vmatmul.bf16.gmra.mxu0 %v523
    %v756 = vpop.f32.mrf.mxu0
    %v757 = vadd.f32 %v542, %v756
    %v758 = vpop.f32.mrf.mxu0
    %v759 = vadd.f32 %v542, %v758
    %760 = vdwg.mxu0
    %v761 = vmax.f32 %v602, 0.0
    %v762 = vmax.f32 %v604, 0.0
    %v763 = vmax.f32 %v607, 0.0
    %v764 = vmax.f32 %v609, 0.0
    %v765 = vmax.f32 %v612, 0.0
    %v766 = vmax.f32 %v614, 0.0
    %v767 = vmax.f32 %v617, 0.0
    %v768 = vmax.f32 %v619, 0.0
    %v769 = vmax.f32 %v622, 0.0
    %v770 = vmax.f32 %v624, 0.0
    %v771 = vmax.f32 %v627, 0.0
    %v772 = vmax.f32 %v629, 0.0
    %v773 = vmax.f32 %v632, 0.0
    %v774 = vmax.f32 %v634, 0.0
    %v775 = vmax.f32 %v637, 0.0
    %v776 = vmax.f32 %v639, 0.0
    %v777 = vmax.f32 %v642, 0.0
    %v778 = vmax.f32 %v644, 0.0
    %v779 = vmax.f32 %v647, 0.0
    %v780 = vmax.f32 %v649, 0.0
    %v781 = vmax.f32 %v652, 0.0
    %v782 = vmax.f32 %v654, 0.0
    %v783 = vmax.f32 %v657, 0.0
    %v784 = vmax.f32 %v659, 0.0
    %v785 = vmax.f32 %v662, 0.0
    %v786 = vmax.f32 %v664, 0.0
    %v787 = vmax.f32 %v667, 0.0
    %v788 = vmax.f32 %v669, 0.0
    %v789 = vmax.f32 %v672, 0.0
    %v790 = vmax.f32 %v674, 0.0
    %v791 = vmax.f32 %v677, 0.0
    %v792 = vmax.f32 %v679, 0.0
    %v793 = vmax.f32 %v682, 0.0
    %v794 = vmax.f32 %v684, 0.0
    %v795 = vmax.f32 %v687, 0.0
    %v796 = vmax.f32 %v689, 0.0
    %v797 = vmax.f32 %v692, 0.0
    %v798 = vmax.f32 %v694, 0.0
    %v799 = vmax.f32 %v697, 0.0
    %v800 = vmax.f32 %v699, 0.0
    %v801 = vmax.f32 %v702, 0.0
    %v802 = vmax.f32 %v704, 0.0
    %v803 = vmax.f32 %v707, 0.0
    %v804 = vmax.f32 %v709, 0.0
    %v805 = vmax.f32 %v712, 0.0
    %v806 = vmax.f32 %v714, 0.0
    %v807 = vmax.f32 %v717, 0.0
    %v808 = vmax.f32 %v719, 0.0
    %v809 = vmax.f32 %v722, 0.0
    %v810 = vmax.f32 %v724, 0.0
    %v811 = vmax.f32 %v727, 0.0
    %v812 = vmax.f32 %v729, 0.0
    %v813 = vmax.f32 %v732, 0.0
    %v814 = vmax.f32 %v734, 0.0
    %v815 = vmax.f32 %v737, 0.0
    %v816 = vmax.f32 %v739, 0.0
    %v817 = vmax.f32 %v742, 0.0
    %v818 = vmax.f32 %v744, 0.0
    %v819 = vmax.f32 %v747, 0.0
    %v820 = vmax.f32 %v749, 0.0
    %v821 = vmax.f32 %v752, 0.0
    %v822 = vmax.f32 %v754, 0.0
    %v823 = vmax.f32 %v757, 0.0
    %v824 = vmax.f32 %v759, 0.0
    %v825 = vld [vmem:[%s5] sm:$0x1]
    %v826 = vpack.c.bf16 %v762, %v761
    %v827 = vpack.c.bf16 %v764, %v763
    %v828 = vpack.c.bf16 %v766, %v765
    %v829 = vpack.c.bf16 %v768, %v767
    %v830 = vpack.c.bf16 %v770, %v769
    %v831 = vpack.c.bf16 %v772, %v771
    %v832 = vpack.c.bf16 %v774, %v773
    %v833 = vpack.c.bf16 %v776, %v775
    %v834 = vpack.c.bf16 %v778, %v777
    %v835 = vpack.c.bf16 %v780, %v779
    %v836 = vpack.c.bf16 %v782, %v781
    %v837 = vpack.c.bf16 %v784, %v783
    %v838 = vpack.c.bf16 %v786, %v785
    %v839 = vpack.c.bf16 %v788, %v787
    %v840 = vpack.c.bf16 %v790, %v789
    %v841 = vpack.c.bf16 %v792, %v791
    %v842 = vpack.c.bf16 %v794, %v793
    %v843 = vpack.c.bf16 %v796, %v795
    %v844 = vpack.c.bf16 %v798, %v797
    %v845 = vpack.c.bf16 %v800, %v799
    %v846 = vpack.c.bf16 %v802, %v801
    %v847 = vpack.c.bf16 %v804, %v803
    %v848 = vpack.c.bf16 %v806, %v805
    %v849 = vpack.c.bf16 %v808, %v807
    %v850 = vpack.c.bf16 %v810, %v809
    %v851 = vpack.c.bf16 %v812, %v811
    %v852 = vpack.c.bf16 %v814, %v813
    %v853 = vpack.c.bf16 %v816, %v815
    %v854 = vpack.c.bf16 %v818, %v817
    %v855 = vpack.c.bf16 %v820, %v819
    %v856 = vpack.c.bf16 %v822, %v821
    %v857 = vpack.c.bf16 %v824, %v823
    %v858 = vld [vmem:[#allocation2] sm:$0x1]
    %860 = vset.pattern.permute.xlu0 0
    %861 = vperm.xlu0 %860, %v858
    %v862 = vpop.permute.xlu0 %861
    %v864 = vperm.slane %v862, 0
    %865 = vmatpush.bf16.xpose.msra.mxu0 %v833
    %866 = vmatpush.bf16.xpose.msra.mxu0 %v832
    %867 = vmatpush.bf16.xpose.msra.mxu0 %v831
    %868 = vmatpush.bf16.xpose.msra.mxu0 %v830
    %869 = vmatpush.bf16.xpose.msra.mxu0 %v829
    %870 = vmatpush.bf16.xpose.msra.mxu0 %v828
    %871 = vmatpush.bf16.xpose.msra.mxu0 %v827
    %872 = vmatpush.bf16.xpose.msra.mxu0 %v826
    %873 = vmatmul.bf16.gmra.mxu0 %v825
    %v874 = vpop.f32.mrf.mxu0
    %v875 = vadd.f32 %v864, %v874
    %v876 = vpop.f32.mrf.mxu0
    %877 = vdwg.mxu0
    %878 = vmatpush.bf16.xpose.msra.mxu0 %v841
    %879 = vmatpush.bf16.xpose.msra.mxu0 %v840
    %880 = vmatpush.bf16.xpose.msra.mxu0 %v839
    %881 = vmatpush.bf16.xpose.msra.mxu0 %v838
    %882 = vmatpush.bf16.xpose.msra.mxu0 %v837
    %883 = vmatpush.bf16.xpose.msra.mxu0 %v836
    %884 = vmatpush.bf16.xpose.msra.mxu0 %v835
    %885 = vmatpush.bf16.xpose.msra.mxu0 %v834
    %886 = vmatmul.bf16.gmra.mxu0 %v825
    %v887 = vpop.f32.mrf.mxu0
    %v888 = vadd.f32 %v864, %v887
    %v889 = vpop.f32.mrf.mxu0
    %890 = vdwg.mxu0
    %891 = vmatpush.bf16.xpose.msra.mxu0 %v849
    %892 = vmatpush.bf16.xpose.msra.mxu0 %v848
    %893 = vmatpush.bf16.xpose.msra.mxu0 %v847
    %894 = vmatpush.bf16.xpose.msra.mxu0 %v846
    %895 = vmatpush.bf16.xpose.msra.mxu0 %v845
    %896 = vmatpush.bf16.xpose.msra.mxu0 %v844
    %897 = vmatpush.bf16.xpose.msra.mxu0 %v843
    %898 = vmatpush.bf16.xpose.msra.mxu0 %v842
    %899 = vmatmul.bf16.gmra.mxu0 %v825
    %v900 = vpop.f32.mrf.mxu0
    %v901 = vadd.f32 %v864, %v900
    %v902 = vpop.f32.mrf.mxu0
    %903 = vdwg.mxu0
    %904 = vmatpush.bf16.xpose.msra.mxu0 %v857
    %905 = vmatpush.bf16.xpose.msra.mxu0 %v856
    %906 = vmatpush.bf16.xpose.msra.mxu0 %v855
    %907 = vmatpush.bf16.xpose.msra.mxu0 %v854
    %908 = vmatpush.bf16.xpose.msra.mxu0 %v853
    %909 = vmatpush.bf16.xpose.msra.mxu0 %v852
    %910 = vmatpush.bf16.xpose.msra.mxu0 %v851
    %911 = vmatpush.bf16.xpose.msra.mxu0 %v850
    %912 = vmatmul.bf16.gmra.mxu0 %v825
    %v913 = vpop.f32.mrf.mxu0
    %v914 = vadd.f32 %v864, %v913
    %v915 = vpop.f32.mrf.mxu0
    %916 = vdwg.mxu0
    %v921 = vrot.slane %v888, 7
    %v922 = vrot.slane %v901, 6
    %v923 = vrot.slane %v914, 5
    %vm924 = vcmask 1040384
    %v925 = vsel %vm924, %v875, %v921
    %vm926 = vcmask 1042434
    %v927 = vsel %vm926, %v922, %v923
    %vm928 = vcmask 1041408
    %v929 = vsel %vm928, %v925, %v927
    %v931 = vlaneseq
    %vm932 = vcmp.ge.s32.totalorder %v931, 0
    %vm933 = vcmp.lt.s32.totalorder %v931, 512
    %vm934 = vmand %vm932, %vm933
    %935 = vst.msk [vmem:[#allocation3] sm:$0xf] %vm934, %v929
    // Predicated region
    $region30: #{tpu_custom_call.1} parent=1 // pred_check
      _
    $region31: #{tpu_custom_call.1} parent=1 // pred_check_branch
      %937 = sbr.rel (0) target = $region33
    $region32: #{tpu_custom_call.1} parent=1 // pred_region
      %939 = vsyncadd [#allocation4], 0
      %s941 = sshll.u32 [#allocation3], 4
      %s942 = int_to_ptr.vmem [resolvable:$true] %s941
      %s943 = sshll.u32 %s7, 4
      %s944 = int_to_ptr.hbm [resolvable:$true] %s943
      %946 = dma.vmem_to_hbm [thread:$0]  %s942, 64, %s944, [#allocation4]
    $region33: #{tpu_custom_call.1} parent=1 // pred_fallthru
      _
    // Predicated region
    $region34: #{tpu_custom_call.1} parent=1 // pred_check
      _
    $region35: #{tpu_custom_call.1} parent=1 // pred_check_branch
      %948 = sbr.rel (0) target = $region37
    $region36: #{tpu_custom_call.1} parent=1 // pred_region
      %950 = dma.done [#allocation4], 64
    $region37: #{tpu_custom_call.1} parent=1 // pred_fallthru
      _
    %951 = vsyncpa [#allocation4], 1

</llo_original>
